<compile_context>
chip_gen: v7x
topology: tpu7x:2x2x1
jax: 0.10.0
libtpu: 0.0.40
codegen_flags: <defaults>
</compile_context>

<pallas_src>
import math

import jax
import jax.numpy as jnp
from jax import lax
from jax.experimental import pallas as pl
from jax.experimental.pallas import tpu as pltpu


def _round_up(x, m):
    return (x + m - 1) // m * m


def _tpu_vmem_budget():
    """Generation-aware scoped-VMEM budget (bytes) + multi-core preference."""
    phys = 128 << 20
    try:
        info = pltpu.get_tpu_info()
        phys = int(getattr(info, "vmem_capacity_bytes", phys))
    except Exception:
        pass
    if phys <= (64 << 20):
        # v7x-class: 64 MiB physical per TensorCore, 2 TCs/chip -> leave
        # headroom and prefer >=2 (even) U tiles so both cores get work.
        return 40 << 20, True
    # v5e / v6e: 128 MiB physical.  (v5e's *default* scoped limit is 16 MiB,
    # but we pass vmem_limit_bytes explicitly so a larger budget is safe.)
    return 64 << 20, False


def _choose_tile_u(h_pad, m_pad, u_128, budget, out_bytes, prefer_multi_tile,
                   requested=None):
    """Pick TILE_U: multiple of 128 that divides u_128, under the VMEM budget."""
    n_units = u_128 // 128
    # Per U-column VMEM: 2 bf16 W buffers + 2 out buffers + 2 bias buffers.
    per_col = 2 * h_pad * 2 + 2 * m_pad * out_bytes + 2 * 4
    # Grid-invariant LHS is still double-buffer-allocated (constant index_map
    # avoids re-DMA, not the 2x allocation); keep ~2 MiB compiler headroom.
    fixed = 2 * m_pad * h_pad * 2 + (2 << 20)
    cap_units = max(1, (budget - fixed) // per_col // 128)
    if requested is not None:
        cap_units = min(cap_units, max(1, _round_up(int(requested), 128) // 128))
    cands = [d for d in range(1, n_units + 1)
             if n_units % d == 0 and d <= cap_units] or [1]
    if prefer_multi_tile and n_units >= 2:
        even = [d for d in cands if (n_units // d) >= 2 and (n_units // d) % 2 == 0]
        multi = [d for d in cands if (n_units // d) >= 2]
        cands = even or multi or cands
    return 128 * max(cands)


def matmul_bias_kernel(lhs_ref, w_ref, b_ref, out_ref):
    """One U tile: (3B, H) x (H, TILE_U) on the MXU, f32 accumulate, + bias."""
    out_ref[...] = (
        jnp.dot(lhs_ref[...], w_ref[...], preferred_element_type=jnp.float32)
        + b_ref[...]
    ).astype(out_ref.dtype)


def efficient_decoder(encoder_output, src_lengths, params, *, tile_u=None):
    B, L, H = encoder_output.shape
    U = params["w"].shape[1]

    # --- glue (plain JAX): gather the last valid timestep per batch row ------
    last_pos = jnp.minimum(src_lengths.astype(jnp.int32) - 1, L - 1)
    valid = last_pos >= 0
    idx = jnp.clip(last_pos, 0, L - 1)
    gathered = jnp.take_along_axis(encoder_output, idx[:, None, None], axis=1)[:, 0, :]
    last_hidden = jnp.where(valid[:, None], gathered, 0.0).astype(jnp.float32)

    # --- LayerNorm + position-embedding add (hoisted: B x H of VPU work) -----
    mean = jnp.mean(last_hidden, axis=-1, keepdims=True)
    var = jnp.mean(jnp.square(last_hidden - mean), axis=-1, keepdims=True)
    xn = (last_hidden - mean) * lax.rsqrt(var + 1e-5)
    xn = xn * params["gamma"] + params["beta"]                       # (B, H)
    # TODO(synk): nn.Dropout(p=0.1) is identity at inference (eval mode); omitted.
    pos = params["pos_emb"][1:4].astype(jnp.float32) * 0.1           # (3, H)
    # b-major stacking: row b*3 + t  ->  output reshapes straight to (B, 3, U),
    # no wrapper-side transpose (saves a full extra HBM pass over the output).
    lhs = (xn[:, None, :] + pos[None, :, :]).reshape(B * 3, H)       # (3B, H)

    # --- pad to TPU-friendly shapes -------------------------------------------
    M = 3 * B
    M_pad = _round_up(M, 16)              # bf16 sublane packing: 16 rows / vreg
    H_pad = _round_up(H, 128)             # MXU K dim
    U_128 = _round_up(U, 128)

    out_dtype = jnp.float32
    out_bytes = jnp.dtype(out_dtype).itemsize
    budget, multi_core = _tpu_vmem_budget()
    tile_u = _choose_tile_u(H_pad, M_pad, U_128, budget, out_bytes,
                            multi_core, requested=tile_u)
    U_pad = U_128                          # tile_u divides U_128 -> no extra pad
    n_tiles = U_pad // tile_u

    lhs_p = jnp.zeros((M_pad, H_pad), jnp.float32).at[:M, :H].set(lhs)
    lhs_p = lhs_p.astype(jnp.bfloat16)
    w_p = jnp.zeros((H_pad, U_pad), jnp.bfloat16).at[:H, :U].set(
        params["w"].astype(jnp.bfloat16))
    b_p = jnp.zeros((1, U_pad), jnp.float32).at[0, :U].set(
        params["b"].astype(jnp.float32))

    # --- Pallas kernel: U-tiled, pipelined matmul + bias ----------------------
    out_flat = pl.pallas_call(
        matmul_bias_kernel,
        out_shape=jax.ShapeDtypeStruct((M_pad, U_pad), out_dtype),
        grid=(n_tiles,),
        in_specs=[
            pl.BlockSpec((M_pad, H_pad), lambda j: (0, 0)),          # LHS (resident)
            pl.BlockSpec((H_pad, tile_u), lambda j: (0, j)),         # W stream (depth-2)
            pl.BlockSpec((1, tile_u), lambda j: (0, j)),             # bias tile
        ],
        out_specs=pl.BlockSpec((M_pad, tile_u), lambda j: (0, j)),   # lane-dense slab
        compiler_params=pltpu.CompilerParams(
            dimension_semantics=("parallel",),                       # megacore on v7x
            vmem_limit_bytes=budget),
        cost_estimate=pl.CostEstimate(
            flops=2 * M_pad * H_pad * U_pad,
            transcendentals=0,
            bytes_accessed=(H_pad * U_pad * 2 + M_pad * H_pad * 2
                            + U_pad * 4 + M_pad * U_pad * out_bytes)),
    )(lhs_p, w_p, b_p)

    # rows are b-major: row b*3 + t  ->  direct (B, 3, U) view.
    return out_flat[:M, :U].reshape(B, 3, U)


def reference(encoder_output, src_lengths, params):
    """Pure-JAX reference mirroring the PyTorch forward (eval mode), f32 math."""
    B, L, H = encoder_output.shape
    last_pos = jnp.minimum(src_lengths.astype(jnp.int32) - 1, L - 1)
    valid = last_pos >= 0
    idx = jnp.clip(last_pos, 0, L - 1)
    lh = jnp.take_along_axis(encoder_output, idx[:, None, None], axis=1)[:, 0, :]
    lh = jnp.where(valid[:, None], lh, 0.0)
    mean = jnp.mean(lh, axis=-1, keepdims=True)
    var = jnp.mean(jnp.square(lh - mean), axis=-1, keepdims=True)
    lh = (lh - mean) * lax.rsqrt(var + 1e-5) * params["gamma"] + params["beta"]
    w = params["w"].astype(jnp.float32)
    outs = []
    for t in range(3):
        cur = lh + params["pos_emb"][t + 1].astype(jnp.float32) * 0.1
        outs.append(cur @ w + params["b"])
    return jnp.stack(outs, axis=1)


def init_params(key, hidden_dim, user_size):
    k_w, k_pos = jax.random.split(key, 2)
    # xavier_uniform with gain=0.1 on torch weight of shape (user_size, hidden_dim)
    bound = 0.1 * math.sqrt(6.0 / (hidden_dim + user_size))
    w_torch = jax.random.uniform(k_w, (user_size, hidden_dim),
                                 minval=-bound, maxval=bound, dtype=jnp.float32)
    return {
        # (H, U), stored/streamed in bf16 (kernel is HBM-bandwidth bound on W).
        "w": w_torch.T.astype(jnp.bfloat16),
        "b": jnp.zeros((user_size,), jnp.float32),
        "gamma": jnp.ones((hidden_dim,), jnp.float32),
        "beta": jnp.zeros((hidden_dim,), jnp.float32),
        "pos_emb": jax.random.normal(k_pos, (4, hidden_dim), dtype=jnp.float32),
    }


if __name__ == "__main__":
    B, L, H, U = 4, 8, 128, 1024

    key = jax.random.PRNGKey(0)
    k_param, k_enc, k_len = jax.random.split(key, 3)

    params = init_params(k_param, H, U)
    encoder_output = jax.random.normal(k_enc, (B, L, H), dtype=jnp.float32)
    src_lengths = jax.random.randint(k_len, (B,), 1, L + 1, dtype=jnp.int32)

    # Demo-scale override so the test exercises a multi-step (grid=(2,))
    # pipelined pass over W; at real shapes the auto-pick chooses multi-MB tiles.
    out = efficient_decoder(encoder_output, src_lengths, params, tile_u=512)
    out = jax.block_until_ready(out)

    ref = reference(encoder_output, src_lengths, params)
    assert out.shape == (B, 3, U)
    # bf16 activations/weights in the kernel vs f32 reference -> relaxed tolerance.
    assert jnp.allclose(out, ref, rtol=2e-2, atol=2e-3), "mismatch vs reference"

    print("KERNEL_OK")
</pallas_src>

<mosaic_0001>
module attributes {stable_mosaic.version = 11 : i64} {
  func.func @matmul_bias_kernel(%arg0: i32, %arg1: memref<16x128xbf16, #tpu.memory_space<vmem>>, %arg2: memref<128x512xbf16, #tpu.memory_space<vmem>>, %arg3: memref<1x512xf32, #tpu.memory_space<vmem>>, %arg4: memref<16x512xf32, #tpu.memory_space<vmem>>) attributes {dimension_semantics = [#tpu.dimension_semantics<parallel>], iteration_bounds = array<i64: 2>, scalar_prefetch = 0 : i64, scratch_operands = 0 : i64, tpu.core_type = #tpu.core_type<tc>, window_params = [{pipeline_mode = #tpu.pipeline_mode<synchronous>, transform_indices = @transform_0, window_bounds = array<i64: 16, 128>}, {transform_indices = @transform_1, window_bounds = array<i64: 128, 512>}, {transform_indices = @transform_2, window_bounds = array<i64: 1, 512>}, {transform_indices = @transform_3, window_bounds = array<i64: 16, 512>}]} {
    %c0 = arith.constant 0 : index
    %c0_0 = arith.constant 0 : index
    %0 = vector.load %arg1[%c0, %c0_0] : memref<16x128xbf16, #tpu.memory_space<vmem>>, vector<16x128xbf16>
    %c0_1 = arith.constant 0 : index
    %c0_2 = arith.constant 0 : index
    %1 = vector.load %arg2[%c0_1, %c0_2] : memref<128x512xbf16, #tpu.memory_space<vmem>>, vector<128x512xbf16>
    %cst = arith.constant dense<0.000000e+00> : vector<16x512xf32>
    %2 = tpu.matmul %0, %1, %cst {dimension_numbers = #tpu.dot_dimension_numbers<[1], [0], [0], [1], [0, 0, 1, 1], [], []>} : vector<16x128xbf16>, vector<128x512xbf16>, vector<16x512xf32> -> vector<16x512xf32>
    %c0_3 = arith.constant 0 : index
    %c0_4 = arith.constant 0 : index
    %3 = vector.load %arg3[%c0_3, %c0_4] : memref<1x512xf32, #tpu.memory_space<vmem>>, vector<1x512xf32>
    %4 = vector.broadcast %3 : vector<1x512xf32> to vector<16x512xf32>
    %5 = arith.addf %2, %4 : vector<16x512xf32>
    %c0_5 = arith.constant 0 : index
    %c0_6 = arith.constant 0 : index
    %6 = vector.load %arg4[%c0_5, %c0_6] : memref<16x512xf32, #tpu.memory_space<vmem>>, vector<16x512xf32>
    tpu.vector_store %arg4[%c0_5, %c0_6], %5 {strides = array<i32>} : memref<16x512xf32, #tpu.memory_space<vmem>>, vector<16x512xf32>,
    return
  }
  func.func @transform_0(%arg0: i32) -> (i32, i32) {
    %c0_i32 = arith.constant 0 : i32
    %c0_i32_0 = arith.constant 0 : i32
    %c0_i32_1 = arith.constant 0 : i32
    return %c0_i32, %c0_i32_0 : i32, i32
  }
  func.func @transform_1(%arg0: i32) -> (i32, i32) {
    %c0_i32 = arith.constant 0 : i32
    %c0_i32_0 = arith.constant 0 : i32
    return %c0_i32, %arg0 : i32, i32
  }
  func.func @transform_2(%arg0: i32) -> (i32, i32) {
    %c0_i32 = arith.constant 0 : i32
    %c0_i32_0 = arith.constant 0 : i32
    return %c0_i32, %arg0 : i32, i32
  }
  func.func @transform_3(%arg0: i32) -> (i32, i32) {
    %c0_i32 = arith.constant 0 : i32
    %c0_i32_0 = arith.constant 0 : i32
    return %c0_i32, %arg0 : i32, i32
  }
}

</mosaic_0001>

<llo_original>
// kernel: tpu_custom_call.1
$region0: #{tpu_custom_call.1}
  #allocation0 [shape = 'u32[]', space=smem, size = 0x4, offset = 0x4, fixed_abs, tag = 'smem constant byte address 0x4 - core index']
  #allocation1 [shape = 'u32[144,128]{1,0:T(1,128)}', space=vmem, size = 0x12000, scoped, tag = 'internal scratch']
  %s0 = inlined_call_operand.hbm [shape: bf16[16,128], index: 0, kind: input, shape index: {}]
  %s1 = inlined_call_operand.hbm [shape: bf16[128,1024], index: 1, kind: input, shape index: {}]
  %s2 = inlined_call_operand.hbm [shape: f32[1,1024], index: 2, kind: input, shape index: {}]
  %s3 = inlined_call_operand.hbm [shape: f32[16,1024], index: 3, kind: output, shape index: {}]
  %s4 = sld [smem:[#allocation0]]
  $region57: #{tpu_custom_call.1} parent=0
    _
  %s6 = ssub.s32 1, %s4
  %s7 = scalar_select 0, %s6, %s4
  $region1: #{tpu_custom_call.1} parent=0
    #allocation2 [shape = 'u8[4096]{0}', space=vmem, size = 0x1000, scoped, tag = 'input window, operand 0, single buffered']
    #allocation3 [shape = 's32[2]{0}', space=sflag, size = 0x8, scoped, tag = 'scoped memory for tpu_custom_call.1']
    #allocation4 [shape = 's32[2]{0}', space=sflag, size = 0x8, scoped, tag = 'scoped memory for tpu_custom_call.1']
    #allocation5 [shape = 'u8[262144]{0}', space=vmem, size = 0x40000, scoped, tag = 'input window, operand 1']
    #allocation6 [shape = 's32[2]{0}', space=sflag, size = 0x8, scoped, tag = 'scoped memory for tpu_custom_call.1']
    #allocation7 [shape = 'u8[4096]{0}', space=vmem, size = 0x1000, scoped, tag = 'input window, operand 2']
    #allocation8 [shape = 'u8[65536]{0}', space=vmem, size = 0x10000, scoped, tag = 'output window, operand 0']
    %8 = vsyncpa [#allocation3], 0
    %9 = vsyncpa [#allocation6], 0
    %s10 = scalar_lea.sflag [#allocation6], 1
    %11 = vsyncpa %s10, 0
    %12 = vsyncpa [#allocation4], 0
    %s13 = scalar_lea.sflag [#allocation4], 1
    %14 = vsyncpa %s13, 0
    loop: start=0, step=1, limit=4
    $region2: #{tpu_custom_call.1} parent=1 // loop_pre_header
      _
    $region3: #{tpu_custom_call.1} parent=1 // loop_header
      %s16 = sphi 0, %s20
      %p17 = scmp.ge.s32.totalorder %s16, 4
      %s24 = sphi 0, %s24
      %s26 = sphi 0, %s24
      %s27 = sphi 0, %s26
      %s41 = sphi 0, %s27
      %s47 = sphi 0, %s49
      %s50 = sphi 0, %s47
      %s51 = sphi 0, %s50
      %s67 = sphi 0, %s51
      %s73 = sphi 0, %s75
      %s76 = sphi 0, %s73
      %s77 = sphi 0, %s76
      %s93 = sphi 0, %s77
      %s99 = sphi 0, %s101
      %s102 = sphi 0, %s99
      %s103 = sphi 0, %s102
      %s119 = sphi 0, %s103
    $region4: #{tpu_custom_call.1} parent=1 // loop_header_branch
      %19 = sbr.rel (%p17) target = $region8
    $region5: #{tpu_custom_call.1} parent=1 // loop_body
      %s21 = ssub.s32 %s16, 1
      %s22 = ssub.s32 %s16, 2
      %s23 = sadd.s32 %s16, 1
      %s25 = sadd.s32 %s24, 1
      %p28 = scmp.eq.s32.totalorder %s16, 1
      %p29 = scmp.ne.s32.totalorder %s24, %s26
      %p30 = scmp.eq.s32.totalorder %s16, 0
      %p31 = por %p29, %p30
      %p32 = scmp.ne.s32.totalorder %s24, %s26
      %p33 = scmp.eq.s32.totalorder %s21, 1
      %p34 = por %p32, %p33
      %p35 = scmp.ne.s32.totalorder %s26, %s27
      %p36 = scmp.eq.s32.totalorder %s21, 0
      %p37 = por %p35, %p36
      %p38 = scmp.ne.s32.totalorder %s26, %s27
      %p39 = scmp.eq.s32.totalorder %s22, 1
      %p40 = por %p38, %p39
      %p42 = scmp.ne.s32.totalorder %s27, %s41
      %p43 = scmp.eq.s32.totalorder %s22, 0
      %p44 = por %p42, %p43
      %s45 = ssub.s32 %s16, %s23
      %p46 = scmp.eq.s32.totalorder %s45, 0
      %s48 = sadd.s32 %s47, 1
      %s49 = scalar_select %p46, %s47, %s48
      %p52 = pneg %p46
      %p53 = scmp.eq.s32.totalorder %s16, 1
      %p54 = por %p52, %p53
      %p55 = scmp.ne.s32.totalorder %s47, %s50
      %p56 = scmp.eq.s32.totalorder %s16, 0
      %p57 = por %p55, %p56
      %p58 = scmp.ne.s32.totalorder %s47, %s50
      %p59 = scmp.eq.s32.totalorder %s21, 1
      %p60 = por %p58, %p59
      %p61 = scmp.ne.s32.totalorder %s50, %s51
      %p62 = scmp.eq.s32.totalorder %s21, 0
      %p63 = por %p61, %p62
      %p64 = scmp.ne.s32.totalorder %s50, %s51
      %p65 = scmp.eq.s32.totalorder %s22, 1
      %p66 = por %p64, %p65
      %p68 = scmp.ne.s32.totalorder %s51, %s67
      %p69 = scmp.eq.s32.totalorder %s22, 0
      %p70 = por %p68, %p69
      %s71 = ssub.s32 %s16, %s23
      %p72 = scmp.eq.s32.totalorder %s71, 0
      %s74 = sadd.s32 %s73, 1
      %s75 = scalar_select %p72, %s73, %s74
      %p78 = pneg %p72
      %p79 = scmp.eq.s32.totalorder %s16, 1
      %p80 = por %p78, %p79
      %p81 = scmp.ne.s32.totalorder %s73, %s76
      %p82 = scmp.eq.s32.totalorder %s16, 0
      %p83 = por %p81, %p82
      %p84 = scmp.ne.s32.totalorder %s73, %s76
      %p85 = scmp.eq.s32.totalorder %s21, 1
      %p86 = por %p84, %p85
      %p87 = scmp.ne.s32.totalorder %s76, %s77
      %p88 = scmp.eq.s32.totalorder %s21, 0
      %p89 = por %p87, %p88
      %p90 = scmp.ne.s32.totalorder %s76, %s77
      %p91 = scmp.eq.s32.totalorder %s22, 1
      %p92 = por %p90, %p91
      %p94 = scmp.ne.s32.totalorder %s77, %s93
      %p95 = scmp.eq.s32.totalorder %s22, 0
      %p96 = por %p94, %p95
      %s97 = ssub.s32 %s16, %s23
      %p98 = scmp.eq.s32.totalorder %s97, 0
      %s100 = sadd.s32 %s99, 1
      %s101 = scalar_select %p98, %s99, %s100
      %p104 = pneg %p98
      %p105 = scmp.eq.s32.totalorder %s16, 1
      %p106 = por %p104, %p105
      %p107 = scmp.ne.s32.totalorder %s99, %s102
      %p108 = scmp.eq.s32.totalorder %s16, 0
      %p109 = por %p107, %p108
      %p110 = scmp.ne.s32.totalorder %s99, %s102
      %p111 = scmp.eq.s32.totalorder %s21, 1
      %p112 = por %p110, %p111
      %p113 = scmp.ne.s32.totalorder %s102, %s103
      %p114 = scmp.eq.s32.totalorder %s21, 0
      %p115 = por %p113, %p114
      %p116 = scmp.ne.s32.totalorder %s102, %s103
      %p117 = scmp.eq.s32.totalorder %s22, 1
      %p118 = por %p116, %p117
      %p120 = scmp.ne.s32.totalorder %s103, %s119
      %p121 = scmp.eq.s32.totalorder %s22, 0
      %p122 = por %p120, %p121
      %p123 = scmp.le.s32.totalorder 1, %s16
      %p124 = scmp.lt.s32.totalorder %s16, 3
      %p125 = pnand %p123, %p124
      %p126 = pneg %p125
      // Predicated region
      $region9: #{tpu_custom_call.1} parent=5 // pred_check
        _
      $region10: #{tpu_custom_call.1} parent=5 // pred_check_branch
        %128 = sbr.rel (%p125) target = $region12
      $region11: #{tpu_custom_call.1} parent=5 // pred_region
        %s129 = ssub.s32 %s16, 1
        // Predicated region
        $region13: #{tpu_custom_call.1} parent=11 // pred_check
          %p130 = pneg %p37
        $region14: #{tpu_custom_call.1} parent=11 // pred_check_branch
          %132 = sbr.rel (%p130) target = $region16
        $region15: #{tpu_custom_call.1} parent=11 // pred_region
          %s134 = ssub.s32 128, 128
          %135 = vsyncadd [#allocation3], %s134
          %s136 = sshll.u32 [#allocation2], 4
          %s137 = int_to_ptr.vmem [resolvable:$true] %s136
          %142 = dma.hbm_to_vmem [thread:$0]  %s0, 128, %s137, [#allocation3], 64, 64, 4
        $region16: #{tpu_custom_call.1} parent=11 // pred_fallthru
          _
      $region12: #{tpu_custom_call.1} parent=5 // pred_fallthru
        _
      %p143 = scmp.lt.s32.totalorder %s16, 2
      // Predicated region
      $region17: #{tpu_custom_call.1} parent=5 // pred_check
        %p144 = pneg %p143
      $region18: #{tpu_custom_call.1} parent=5 // pred_check_branch
        %146 = sbr.rel (%p144) target = $region20
      $region19: #{tpu_custom_call.1} parent=5 // pred_region
        // Predicated region
        $region21: #{tpu_custom_call.1} parent=19 // pred_check
          %p147 = pneg %p57
        $region22: #{tpu_custom_call.1} parent=19 // pred_check_branch
          %149 = sbr.rel (%p147) target = $region24
        $region23: #{tpu_custom_call.1} parent=19 // pred_region
          %s150 = sand.u32 %s16, 1
          %s151 = scalar_lea.sflag [#allocation6], %s150
          %s152 = sand.u32 %s47, 1
          %s153 = smul.addr %s152, 256
          %s154 = scalar_lea.vmem [#allocation5], %s153
          %s155 = smul.u32 4, %s16
          %s157 = ssub.s32 4096, 4096
          %158 = vsyncadd %s151, %s157
          %s159 = smul.addr %s155, 64
          %s160 = scalar_lea.hbm %s1, %s159
          %s161 = sshll.u32 %s154, 4
          %s162 = int_to_ptr.vmem [resolvable:$true] %s161
          %167 = dma.hbm_to_vmem [thread:$0]  %s160, 4096, %s162, %s151, 512, 256, 16
        $region24: #{tpu_custom_call.1} parent=19 // pred_fallthru
          _
        // Predicated region
        $region25: #{tpu_custom_call.1} parent=19 // pred_check
          %p168 = pneg %p83
        $region26: #{tpu_custom_call.1} parent=19 // pred_check_branch
          %170 = sbr.rel (%p168) target = $region28
        $region27: #{tpu_custom_call.1} parent=19 // pred_region
          %s171 = sand.u32 %s16, 1
          %s172 = scalar_lea.sflag [#allocation6], %s171
          %s173 = sand.u32 %s73, 1
          %s174 = smul.addr %s173, 4
          %s175 = scalar_lea.vmem [#allocation7], %s174
          %s176 = smul.u32 4, %s16
          %s178 = ssub.s32 64, 64
          %179 = vsyncadd %s172, %s178
          %s180 = smul.addr %s176, 16
          %s181 = scalar_lea.hbm %s2, %s180
          %s183 = sshll.u32 %s175, 4
          %s184 = int_to_ptr.vmem [resolvable:$true] %s183
          %186 = dma.hbm_to_vmem [thread:$0]  %s181, 64, %s184, %s172
        $region28: #{tpu_custom_call.1} parent=19 // pred_fallthru
          _
      $region20: #{tpu_custom_call.1} parent=5 // pred_fallthru
        _
      %p187 = scmp.le.s32.totalorder 1, %s16
      %p188 = scmp.lt.s32.totalorder %s16, 3
      %p189 = pnand %p187, %p188
      %p190 = pneg %p189
      // Predicated region
      $region29: #{tpu_custom_call.1} parent=5 // pred_check
        _
      $region30: #{tpu_custom_call.1} parent=5 // pred_check_branch
        %192 = sbr.rel (%p189) target = $region32
      $region31: #{tpu_custom_call.1} parent=5 // pred_region
        %s193 = ssub.s32 %s16, 1
        // Predicated region
        $region33: #{tpu_custom_call.1} parent=31 // pred_check
          %p194 = pneg %p37
        $region34: #{tpu_custom_call.1} parent=31 // pred_check_branch
          %196 = sbr.rel (%p194) target = $region36
        $region35: #{tpu_custom_call.1} parent=31 // pred_region
          %197 = dma.done [#allocation3], 128
        $region36: #{tpu_custom_call.1} parent=31 // pred_fallthru
          _
        %s198 = sand.u32 %s21, 1
        %s199 = scalar_lea.sflag [#allocation6], %s198
        %s200 = sand.u32 %s50, 1
        %s201 = smul.addr %s200, 256
        %s202 = scalar_lea.vmem [#allocation5], %s201
        // Predicated region
        $region37: #{tpu_custom_call.1} parent=31 // pred_check
          %p203 = pneg %p63
        $region38: #{tpu_custom_call.1} parent=31 // pred_check_branch
          %205 = sbr.rel (%p203) target = $region40
        $region39: #{tpu_custom_call.1} parent=31 // pred_region
          %206 = dma.done %s199, 4096
        $region40: #{tpu_custom_call.1} parent=31 // pred_fallthru
          _
        %s207 = sand.u32 %s21, 1
        %s208 = scalar_lea.sflag [#allocation6], %s207
        %s209 = sand.u32 %s76, 1
        %s210 = smul.addr %s209, 4
        %s211 = scalar_lea.vmem [#allocation7], %s210
        // Predicated region
        $region41: #{tpu_custom_call.1} parent=31 // pred_check
          %p212 = pneg %p89
        $region42: #{tpu_custom_call.1} parent=31 // pred_check_branch
          %214 = sbr.rel (%p212) target = $region44
        $region43: #{tpu_custom_call.1} parent=31 // pred_region
          %215 = dma.done %s208, 64
        $region44: #{tpu_custom_call.1} parent=31 // pred_fallthru
          _
        %p216 = pneg %p37
        %p217 = pneg %p34
        %s218 = sand.u32 %s21, 1
        %s219 = scalar_lea.sflag [#allocation6], %s218
        %s220 = sand.u32 %s50, 1
        %s221 = smul.addr %s220, 256
        %s222 = scalar_lea.vmem [#allocation5], %s221
        %p223 = pneg %p63
        %p224 = pneg %p60
        %s225 = sand.u32 %s21, 1
        %s226 = scalar_lea.sflag [#allocation6], %s225
        %s227 = sand.u32 %s76, 1
        %s228 = smul.addr %s227, 4
        %s229 = scalar_lea.vmem [#allocation7], %s228
        %p230 = pneg %p89
        %p231 = pneg %p86
        %p232 = pneg %p115
        %p233 = pneg %p112
        %s234 = sand.u32 %s102, 1
        %s235 = scalar_lea.sflag [#allocation4], %s234
        %s236 = sand.u32 %s102, 1
        %s237 = smul.addr %s236, 64
        %s238 = scalar_lea.vmem [#allocation8], %s237
        %s239 = smul.u32 4, %s21
        %s240 = smul.u32 4, %s21
        %s241 = smul.u32 4, %s21
        %v243 = vld [vmem:[#allocation2] sm:$0xf]
        %v244 = vld [vmem:[#allocation2 + $0x4] sm:$0xf]
        %v245 = vld [vmem:[%s202] sm:$0xff]
        %v246 = vld [vmem:[%s202 + $0x8] sm:$0xff]
        %v247 = vld [vmem:[%s202 + $0x10] sm:$0xff]
        %v248 = vld [vmem:[%s202 + $0x18] sm:$0xff]
        %v249 = vld [vmem:[%s202 + $0x20] sm:$0xff]
        %v250 = vld [vmem:[%s202 + $0x28] sm:$0xff]
        %v251 = vld [vmem:[%s202 + $0x30] sm:$0xff]
        %v252 = vld [vmem:[%s202 + $0x38] sm:$0xff]
        %v253 = vld [vmem:[%s202 + $0x40] sm:$0xff]
        %v254 = vld [vmem:[%s202 + $0x48] sm:$0xff]
        %v255 = vld [vmem:[%s202 + $0x50] sm:$0xff]
        %v256 = vld [vmem:[%s202 + $0x58] sm:$0xff]
        %v257 = vld [vmem:[%s202 + $0x60] sm:$0xff]
        %v258 = vld [vmem:[%s202 + $0x68] sm:$0xff]
        %v259 = vld [vmem:[%s202 + $0x70] sm:$0xff]
        %v260 = vld [vmem:[%s202 + $0x78] sm:$0xff]
        %v261 = vld [vmem:[%s202 + $0x80] sm:$0xff]
        %v262 = vld [vmem:[%s202 + $0x88] sm:$0xff]
        %v263 = vld [vmem:[%s202 + $0x90] sm:$0xff]
        %v264 = vld [vmem:[%s202 + $0x98] sm:$0xff]
        %v265 = vld [vmem:[%s202 + $0xa0] sm:$0xff]
        %v266 = vld [vmem:[%s202 + $0xa8] sm:$0xff]
        %v267 = vld [vmem:[%s202 + $0xb0] sm:$0xff]
        %v268 = vld [vmem:[%s202 + $0xb8] sm:$0xff]
        %v269 = vld [vmem:[%s202 + $0xc0] sm:$0xff]
        %v270 = vld [vmem:[%s202 + $0xc8] sm:$0xff]
        %v271 = vld [vmem:[%s202 + $0xd0] sm:$0xff]
        %v272 = vld [vmem:[%s202 + $0xd8] sm:$0xff]
        %v273 = vld [vmem:[%s202 + $0xe0] sm:$0xff]
        %v274 = vld [vmem:[%s202 + $0xe8] sm:$0xff]
        %v275 = vld [vmem:[%s202 + $0xf0] sm:$0xff]
        %v276 = vld [vmem:[%s202 + $0xf8] sm:$0xff]
        %v277 = vld [vmem:[%s211] sm:$0xf]
        %v279 = vlaneseq
        %v280 = vshrl.u32 %v279, 7
        %v281 = vsub.s32 0, %v280
        %v282 = vrot.slane %v277, %v281
        %v283 = vlaneseq
        %v284 = vshrl.u32 %v283, 7
        %v285 = vsub.s32 1, %v284
        %v286 = vrot.slane %v277, %v285
        %v287 = vlaneseq
        %v288 = vshrl.u32 %v287, 7
        %v289 = vsub.s32 2, %v288
        %v290 = vrot.slane %v277, %v289
        %v291 = vlaneseq
        %v292 = vshrl.u32 %v291, 7
        %v293 = vsub.s32 3, %v292
        %v294 = vrot.slane %v277, %v293
        %v301 = vunpack.c.l.b16 %v243
        %v302 = vunpack.c.l.b16 %v244
        %v303 = vpack.c.b16 %v302, %v301
        %v337 = vunpack.c.l.b16 %v245
        %v338 = vunpack.c.h.b16 %v245
        %v339 = vunpack.c.l.b16 %v246
        %v340 = vunpack.c.h.b16 %v246
        %v341 = vunpack.c.l.b16 %v247
        %v342 = vunpack.c.h.b16 %v247
        %v343 = vunpack.c.l.b16 %v248
        %v344 = vunpack.c.h.b16 %v248
        %v345 = vunpack.c.l.b16 %v249
        %v346 = vunpack.c.h.b16 %v249
        %v347 = vunpack.c.l.b16 %v250
        %v348 = vunpack.c.h.b16 %v250
        %v349 = vunpack.c.l.b16 %v251
        %v350 = vunpack.c.h.b16 %v251
        %v351 = vunpack.c.l.b16 %v252
        %v352 = vunpack.c.h.b16 %v252
        %v353 = vunpack.c.l.b16 %v253
        %v354 = vunpack.c.h.b16 %v253
        %v355 = vunpack.c.l.b16 %v254
        %v356 = vunpack.c.h.b16 %v254
        %v357 = vunpack.c.l.b16 %v255
        %v358 = vunpack.c.h.b16 %v255
        %v359 = vunpack.c.l.b16 %v256
        %v360 = vunpack.c.h.b16 %v256
        %v361 = vunpack.c.l.b16 %v257
        %v362 = vunpack.c.h.b16 %v257
        %v363 = vunpack.c.l.b16 %v258
        %v364 = vunpack.c.h.b16 %v258
        %v365 = vunpack.c.l.b16 %v259
        %v366 = vunpack.c.h.b16 %v259
        %v367 = vunpack.c.l.b16 %v260
        %v368 = vunpack.c.h.b16 %v260
        %v369 = vunpack.c.l.b16 %v261
        %v370 = vunpack.c.h.b16 %v261
        %v371 = vunpack.c.l.b16 %v262
        %v372 = vunpack.c.h.b16 %v262
        %v373 = vunpack.c.l.b16 %v263
        %v374 = vunpack.c.h.b16 %v263
        %v375 = vunpack.c.l.b16 %v264
        %v376 = vunpack.c.h.b16 %v264
        %v377 = vunpack.c.l.b16 %v265
        %v378 = vunpack.c.h.b16 %v265
        %v379 = vunpack.c.l.b16 %v266
        %v380 = vunpack.c.h.b16 %v266
        %v381 = vunpack.c.l.b16 %v267
        %v382 = vunpack.c.h.b16 %v267
        %v383 = vunpack.c.l.b16 %v268
        %v384 = vunpack.c.h.b16 %v268
        %v385 = vunpack.c.l.b16 %v269
        %v386 = vunpack.c.h.b16 %v269
        %v387 = vunpack.c.l.b16 %v270
        %v388 = vunpack.c.h.b16 %v270
        %v389 = vunpack.c.l.b16 %v271
        %v390 = vunpack.c.h.b16 %v271
        %v391 = vunpack.c.l.b16 %v272
        %v392 = vunpack.c.h.b16 %v272
        %v393 = vunpack.c.l.b16 %v273
        %v394 = vunpack.c.h.b16 %v273
        %v395 = vunpack.c.l.b16 %v274
        %v396 = vunpack.c.h.b16 %v274
        %v397 = vunpack.c.l.b16 %v275
        %v398 = vunpack.c.h.b16 %v275
        %v399 = vunpack.c.l.b16 %v276
        %v400 = vunpack.c.h.b16 %v276
        %v401 = vpack.c.b16 %v341, %v337
        %v402 = vpack.c.b16 %v342, %v338
        %v403 = vpack.c.b16 %v343, %v339
        %v404 = vpack.c.b16 %v344, %v340
        %v405 = vpack.c.b16 %v349, %v345
        %v406 = vpack.c.b16 %v350, %v346
        %v407 = vpack.c.b16 %v351, %v347
        %v408 = vpack.c.b16 %v352, %v348
        %v409 = vpack.c.b16 %v357, %v353
        %v410 = vpack.c.b16 %v358, %v354
        %v411 = vpack.c.b16 %v359, %v355
        %v412 = vpack.c.b16 %v360, %v356
        %v413 = vpack.c.b16 %v365, %v361
        %v414 = vpack.c.b16 %v366, %v362
        %v415 = vpack.c.b16 %v367, %v363
        %v416 = vpack.c.b16 %v368, %v364
        %v417 = vpack.c.b16 %v373, %v369
        %v418 = vpack.c.b16 %v374, %v370
        %v419 = vpack.c.b16 %v375, %v371
        %v420 = vpack.c.b16 %v376, %v372
        %v421 = vpack.c.b16 %v381, %v377
        %v422 = vpack.c.b16 %v382, %v378
        %v423 = vpack.c.b16 %v383, %v379
        %v424 = vpack.c.b16 %v384, %v380
        %v425 = vpack.c.b16 %v389, %v385
        %v426 = vpack.c.b16 %v390, %v386
        %v427 = vpack.c.b16 %v391, %v387
        %v428 = vpack.c.b16 %v392, %v388
        %v429 = vpack.c.b16 %v397, %v393
        %v430 = vpack.c.b16 %v398, %v394
        %v431 = vpack.c.b16 %v399, %v395
        %v432 = vpack.c.b16 %v400, %v396
        %465 = vmatprep.subr.bf16.mxu0 %v402
        %466 = vmatpush1.bf16.msra.mxu0 %v401
        %467 = vmatprep.subr.bf16.mxu0 %v406
        %468 = vmatpush1.bf16.msra.mxu0 %v405
        %469 = vmatprep.subr.bf16.mxu0 %v410
        %470 = vmatpush1.bf16.msra.mxu0 %v409
        %471 = vmatprep.subr.bf16.mxu0 %v414
        %472 = vmatpush1.bf16.msra.mxu0 %v413
        %473 = vmatprep.subr.bf16.mxu0 %v418
        %474 = vmatpush1.bf16.msra.mxu0 %v417
        %475 = vmatprep.subr.bf16.mxu0 %v422
        %476 = vmatpush1.bf16.msra.mxu0 %v421
        %477 = vmatprep.subr.bf16.mxu0 %v426
        %478 = vmatpush1.bf16.msra.mxu0 %v425
        %479 = vmatprep.subr.bf16.mxu0 %v430
        %480 = vmatpush1.bf16.msra.mxu0 %v429
        %481 = vmatprep.subr.bf16.mxu0 0
        %482 = vmatpush1.bf16.msra.mxu0 0
        %483 = vmatprep.subr.bf16.mxu0 0
        %484 = vmatpush1.bf16.msra.mxu0 0
        %485 = vmatprep.subr.bf16.mxu0 0
        %486 = vmatpush1.bf16.msra.mxu0 0
        %487 = vmatprep.subr.bf16.mxu0 0
        %488 = vmatpush1.bf16.msra.mxu0 0
        %489 = vmatprep.subr.bf16.mxu0 0
        %490 = vmatpush1.bf16.msra.mxu0 0
        %491 = vmatprep.subr.bf16.mxu0 0
        %492 = vmatpush1.bf16.msra.mxu0 0
        %493 = vmatprep.subr.bf16.mxu0 0
        %494 = vmatpush1.bf16.msra.mxu0 0
        %495 = vmatprep.subr.bf16.mxu0 0
        %496 = vmatpush1.bf16.msra.mxu0 0
        %497 = vmatprep.mubr.bf16.mxu0 0
        %498 = vmatmul.mubr.bf16.gmra.mrb[0].mxu0 %v303
        %v499 = vpop.f32.mrb[0].mxu0
        %v500 = vadd.f32 %v282, %v499
        %v501 = vpop.f32.mrb[0].mxu0
        %v502 = vadd.f32 %v286, %v501
        %v503 = vpop.f32.mrb[0].mxu0
        %v504 = vadd.f32 %v282, %v503
        %v505 = vpop.f32.mrb[0].mxu0
        %v506 = vadd.f32 %v286, %v505
        %507 = vdwg.mxu0
        %508 = vmatprep.subr.bf16.mxu0 %v404
        %509 = vmatpush1.bf16.msra.mxu0 %v403
        %510 = vmatprep.subr.bf16.mxu0 %v408
        %511 = vmatpush1.bf16.msra.mxu0 %v407
        %512 = vmatprep.subr.bf16.mxu0 %v412
        %513 = vmatpush1.bf16.msra.mxu0 %v411
        %514 = vmatprep.subr.bf16.mxu0 %v416
        %515 = vmatpush1.bf16.msra.mxu0 %v415
        %516 = vmatprep.subr.bf16.mxu0 %v420
        %517 = vmatpush1.bf16.msra.mxu0 %v419
        %518 = vmatprep.subr.bf16.mxu0 %v424
        %519 = vmatpush1.bf16.msra.mxu0 %v423
        %520 = vmatprep.subr.bf16.mxu0 %v428
        %521 = vmatpush1.bf16.msra.mxu0 %v427
        %522 = vmatprep.subr.bf16.mxu0 %v432
        %523 = vmatpush1.bf16.msra.mxu0 %v431
        %524 = vmatprep.subr.bf16.mxu0 0
        %525 = vmatpush1.bf16.msra.mxu0 0
        %526 = vmatprep.subr.bf16.mxu0 0
        %527 = vmatpush1.bf16.msra.mxu0 0
        %528 = vmatprep.subr.bf16.mxu0 0
        %529 = vmatpush1.bf16.msra.mxu0 0
        %530 = vmatprep.subr.bf16.mxu0 0
        %531 = vmatpush1.bf16.msra.mxu0 0
        %532 = vmatprep.subr.bf16.mxu0 0
        %533 = vmatpush1.bf16.msra.mxu0 0
        %534 = vmatprep.subr.bf16.mxu0 0
        %535 = vmatpush1.bf16.msra.mxu0 0
        %536 = vmatprep.subr.bf16.mxu0 0
        %537 = vmatpush1.bf16.msra.mxu0 0
        %538 = vmatprep.subr.bf16.mxu0 0
        %539 = vmatpush1.bf16.msra.mxu0 0
        %540 = vmatprep.mubr.bf16.mxu0 0
        %541 = vmatmul.mubr.bf16.gmra.mrb[0].mxu0 %v303
        %v542 = vpop.f32.mrb[0].mxu0
        %v543 = vadd.f32 %v290, %v542
        %v544 = vpop.f32.mrb[0].mxu0
        %v545 = vadd.f32 %v294, %v544
        %v546 = vpop.f32.mrb[0].mxu0
        %v547 = vadd.f32 %v290, %v546
        %v548 = vpop.f32.mrb[0].mxu0
        %v549 = vadd.f32 %v294, %v548
        %550 = vdwg.mxu0
        %551 = vst [vmem:[%s238] sm:$0xff] %v500
        %552 = vst [vmem:[%s238 + $0x8] sm:$0xff] %v502
        %553 = vst [vmem:[%s238 + $0x10] sm:$0xff] %v543
        %554 = vst [vmem:[%s238 + $0x18] sm:$0xff] %v545
        %555 = vst [vmem:[%s238 + $0x20] sm:$0xff] %v504
        %556 = vst [vmem:[%s238 + $0x28] sm:$0xff] %v506
        %557 = vst [vmem:[%s238 + $0x30] sm:$0xff] %v547
        %558 = vst [vmem:[%s238 + $0x38] sm:$0xff] %v549
        %s559 = sand.u32 %s102, 1
        %s560 = scalar_lea.sflag [#allocation4], %s559
        %s561 = sand.u32 %s102, 1
        %s562 = smul.addr %s561, 64
        %s563 = scalar_lea.vmem [#allocation8], %s562
        // Predicated region
        $region45: #{tpu_custom_call.1} parent=31 // pred_check
          %p564 = pneg %p112
        $region46: #{tpu_custom_call.1} parent=31 // pred_check_branch
          %566 = sbr.rel (%p564) target = $region48
        $region47: #{tpu_custom_call.1} parent=31 // pred_region
          %s567 = smul.u32 4, %s21
          %s569 = ssub.s32 1024, 1024
          %570 = vsyncadd %s560, %s569
          %s571 = smul.addr %s567, 128
          %s572 = scalar_lea.hbm %s3, %s571
          %s573 = sshll.u32 %s563, 4
          %s574 = int_to_ptr.vmem [resolvable:$true] %s573
          %579 = dma.vmem_to_hbm [thread:$0]  %s574, 1024, %s572, %s560, 512, 1024, 32
        $region48: #{tpu_custom_call.1} parent=31 // pred_fallthru
          _
      $region32: #{tpu_custom_call.1} parent=5 // pred_fallthru
        _
      %p580 = scmp.le.s32.totalorder 2, %s16
      // Predicated region
      $region49: #{tpu_custom_call.1} parent=5 // pred_check
        %p581 = pneg %p580
      $region50: #{tpu_custom_call.1} parent=5 // pred_check_branch
        %583 = sbr.rel (%p581) target = $region52
      $region51: #{tpu_custom_call.1} parent=5 // pred_region
        %s584 = ssub.s32 %s16, 2
        // Predicated region
        $region53: #{tpu_custom_call.1} parent=51 // pred_check
          %p585 = pneg %p118
        $region54: #{tpu_custom_call.1} parent=51 // pred_check_branch
          %587 = sbr.rel (%p585) target = $region56
        $region55: #{tpu_custom_call.1} parent=51 // pred_region
          %s588 = sand.u32 %s103, 1
          %s589 = scalar_lea.sflag [#allocation4], %s588
          %s590 = sand.u32 %s103, 1
          %s591 = smul.addr %s590, 64
          %s592 = scalar_lea.vmem [#allocation8], %s591
          %593 = dma.done %s589, 1024
        $region56: #{tpu_custom_call.1} parent=51 // pred_fallthru
          _
      $region52: #{tpu_custom_call.1} parent=5 // pred_fallthru
        _
    $region6: #{tpu_custom_call.1} parent=1 // loop_footer
      %s20 = sadd.s32 1, %s16
    $region7: #{tpu_custom_call.1} parent=1 // loop_footer_branch
      %15 = sbr.rel target = $region3
    $region8: #{tpu_custom_call.1} parent=1 // loop_exit
      _
    %594 = vsyncpa [#allocation3], 1
    %s595 = scalar_lea.sflag [#allocation3], 1
    %596 = vsyncpa %s595, 1
    %597 = vsyncpa [#allocation6], 1
    %s598 = scalar_lea.sflag [#allocation6], 1
    %599 = vsyncpa %s598, 1
    %600 = vsyncpa [#allocation4], 1
    %s601 = scalar_lea.sflag [#allocation4], 1
    %602 = vsyncpa %s601, 1

</llo_original>
